<compile_context>
chip_gen: v6e
topology: v6e:2x2x1
jax: 0.10.0
libtpu: 0.0.40
codegen_flags: <defaults>
</compile_context>

<pallas_src>
from functools import lru_cache, partial

import numpy as np
import jax
import jax.numpy as jnp
from jax.experimental import pallas as pl
from jax.experimental.pallas import tpu as pltpu


def _round_up(x, m):
    return ((x + m - 1) // m) * m


# ----------------------------- kernels -----------------------------

def _irfft_matmul_kernel(x_ref, w_ref, o_ref):
    # out[r, n] = sum_k x[r, k] * W[k, n]  (single fused MXU matmul per tile)
    o_ref[...] = jnp.dot(
        x_ref[...], w_ref[...], preferred_element_type=jnp.float32
    ).astype(o_ref.dtype)


def _irfft_matmul_ktiled_kernel(x_ref, w_ref, o_ref, acc_ref):
    # K-tiled variant: f32 accumulator scratch, K is the innermost "arbitrary" axis.
    @pl.when(pl.program_id(2) == 0)
    def _():
        acc_ref[...] = jnp.zeros_like(acc_ref)

    acc_ref[...] += jnp.dot(x_ref[...], w_ref[...], preferred_element_type=jnp.float32)

    @pl.when(pl.program_id(2) == pl.num_programs(2) - 1)
    def _():
        o_ref[...] = acc_ref[...].astype(o_ref.dtype)


# ------------------------- weight synthesis -------------------------

@lru_cache(maxsize=32)
def _synthesis_matrix_np(m_used, size, k_rows, n_cols, np_dtype):
    """Padded real irfft synthesis matrix (k_rows, n_cols), cached on the host.

    Acts on [real_modes ; imag_modes] stacked along K.  DC / even-size Nyquist modes
    weighted once, others twice; 1/size normalization; -sin for the imaginary part,
    forced to exactly 0 at DC/Nyquist (irfft ignores Im there).  Matches
    torch.fft.irfft / jnp.fft.irfft.
    """
    k = np.arange(m_used)[:, None].astype(np.float64)
    n = np.arange(size)[None, :].astype(np.float64)
    ang = 2.0 * np.pi * k * n / size
    is_edge = (k == 0) | ((size % 2 == 0) & (k == size // 2))
    scale = np.where(is_edge, 1.0, 2.0) / size
    cr = scale * np.cos(ang)                             # weights on real(x)
    ci = np.where(is_edge, 0.0, -scale * np.sin(ang))    # weights on imag(x), exact 0 at edges
    w = np.concatenate([cr, ci], axis=0)                 # (2*m_used, size)
    w_pad = np.zeros((k_rows, n_cols), dtype=np.float64)
    w_pad[: 2 * m_used, :size] = w
    return w_pad.astype(np_dtype)


# ------------------------- VMEM budget / tiles -------------------------

def _vmem_capacity_bytes():
    try:
        info = pltpu.get_tpu_info()
        for name in ("vmem_capacity_bytes", "vmem_size_bytes", "vmem_bytes"):
            v = getattr(info, name, None)
            if v:
                return int(v)
    except Exception:
        pass
    return 64 * 1024 * 1024  # conservative (v7x per-TC); safe on all generations


def _pad_ok(base, tile, max_frac):
    return (_round_up(base, tile) - base) <= max_frac * base


def _tile_candidates(rows_p8, n_cap):
    tr = {t for t in (512, 256, 128, 64, 32, 16, 8) if t <= rows_p8}
    if rows_p8 <= 1024:
        tr.add(rows_p8)
    tn = {t for t in (4096, 2048, 1024, 512, 256, 128) if t <= n_cap}
    if n_cap <= 8192:
        tn.add(n_cap)
    return sorted(tr, reverse=True), sorted(tn, reverse=True)


def _choose_tiles_fullk(rows_p8, Kp, Np, xb, wb, ob, budget, max_pad_frac=0.125):
    """Largest (TR, TN) with full-K tiles whose double-buffered footprint fits budget."""
    tr_cands, tn_cands = _tile_candidates(rows_p8, Np)
    for tn in tn_cands:                       # prefer wide, lane-dense output tiles
        if not _pad_ok(Np, tn, max_pad_frac):
            continue
        for tr in tr_cands:
            if not _pad_ok(rows_p8, tr, max_pad_frac):
                continue
            vmem = 2 * (tr * Kp * xb + Kp * tn * wb + tr * tn * ob)
            if vmem <= budget:
                return tr, tn
    return None


def _choose_tiles_ktiled(rows_p8, Kp, Np, xb, wb, ob, budget, max_pad_frac=0.125):
    """Fallback for very large K: keep TR/TN big, tile K with an accumulator."""
    tr_cands, tn_cands = _tile_candidates(rows_p8, min(Np, 2048))
    tk_cands = sorted({t for t in (4096, 2048, 1024, 512, 256, 128) if t <= Kp},
                      reverse=True) or [128]
    for tn in tn_cands:
        if not _pad_ok(Np, tn, max_pad_frac):
            continue
        for tr in tr_cands:
            if not _pad_ok(rows_p8, tr, max_pad_frac):
                continue
            for tk in tk_cands:
                if not _pad_ok(Kp, tk, max_pad_frac):
                    continue
                vmem = (2 * (tr * tk * xb + tk * tn * wb)
                        + tr * tn * 4            # f32 accumulator scratch
                        + 2 * tr * tn * ob)      # double-buffered output
                if vmem <= budget:
                    return tr, tn, tk
    return 8, 128, 128


# ----------------------------- wrapper -----------------------------

@partial(jax.jit, static_argnums=(1, 2, 3))
def _inverse_fft_impl(x, size, compute_dtype, out_dtype):
    B, C, M = x.shape
    m_used = min(M, size // 2 + 1)      # torch trims / zero-pads modes to size//2+1
    rows = B * C
    K = 2 * m_used

    xb = np.dtype(compute_dtype).itemsize
    wb = xb
    ob = np.dtype(out_dtype).itemsize

    Kp = _round_up(K, 128)
    Np = _round_up(size, 128)
    rows_p8 = _round_up(rows, 8)

    cap = _vmem_capacity_bytes()
    budget = int(cap * 0.65)            # target for the double-buffered working set
    vmem_limit = int(cap * 0.90)        # scoped-VMEM limit handed to Mosaic

    full_k = _choose_tiles_fullk(rows_p8, Kp, Np, xb, wb, ob, budget)
    if full_k is not None:
        TR, TN = full_k
        TK = Kp
    else:
        TR, TN, TK = _choose_tiles_ktiled(rows_p8, Kp, Np, xb, wb, ob, budget)

    rows_final = _round_up(rows_p8, TR)
    n_final = _round_up(Np, TN)
    k_final = _round_up(Kp, TK)

    # Activations: [real ; imag] packed along K into one zero-initialised buffer
    # (single fused pad; no separate concatenate + pad materialisations).
    xr = jnp.real(x[..., :m_used]).astype(compute_dtype).reshape(rows, m_used)
    xi = jnp.imag(x[..., :m_used]).astype(compute_dtype).reshape(rows, m_used)
    x_pad = jnp.zeros((rows_final, k_final), dtype=compute_dtype)
    x_pad = x_pad.at[:rows, :m_used].set(xr)
    x_pad = x_pad.at[:rows, m_used:K].set(xi)

    # Synthesis matrix: host-cached, padded once, baked as a compile-time constant.
    w = jnp.asarray(_synthesis_matrix_np(m_used, size, k_final, n_final,
                                         np.dtype(compute_dtype)))

    cost = pl.CostEstimate(
        flops=2 * rows_final * k_final * n_final,
        transcendentals=0,
        bytes_accessed=(rows_final * k_final * xb
                        + k_final * n_final * wb
                        + rows_final * n_final * ob),
    )

    n_tiles = n_final // TN
    r_tiles = rows_final // TR

    if full_k is not None:
        # Pick grid order so the operand with the larger total HBM traffic is streamed
        # exactly once (its block index is constant across the inner grid axis).
        x_bytes_tot = rows_final * k_final * xb
        w_bytes_tot = k_final * n_final * wb
        n_outer = (w_bytes_tot + x_bytes_tot * n_tiles
                   <= x_bytes_tot + w_bytes_tot * r_tiles)
        if n_outer:
            grid = (n_tiles, r_tiles)
            x_spec = pl.BlockSpec((TR, k_final), lambda n, r: (r, 0))
            w_spec = pl.BlockSpec((k_final, TN), lambda n, r: (0, n))
            o_spec = pl.BlockSpec((TR, TN), lambda n, r: (r, n))
        else:
            grid = (r_tiles, n_tiles)
            x_spec = pl.BlockSpec((TR, k_final), lambda r, n: (r, 0))
            w_spec = pl.BlockSpec((k_final, TN), lambda r, n: (0, n))
            o_spec = pl.BlockSpec((TR, TN), lambda r, n: (r, n))
        out = pl.pallas_call(
            _irfft_matmul_kernel,
            out_shape=jax.ShapeDtypeStruct((rows_final, n_final), out_dtype),
            grid=grid,
            in_specs=[x_spec, w_spec],
            out_specs=o_spec,
            compiler_params=pltpu.CompilerParams(
                dimension_semantics=("parallel", "parallel"),
                vmem_limit_bytes=vmem_limit),
            cost_estimate=cost,
        )(x_pad, w)
    else:
        grid = (r_tiles, n_tiles, k_final // TK)
        out = pl.pallas_call(
            _irfft_matmul_ktiled_kernel,
            out_shape=jax.ShapeDtypeStruct((rows_final, n_final), out_dtype),
            grid=grid,
            in_specs=[pl.BlockSpec((TR, TK), lambda r, n, k: (r, k)),
                      pl.BlockSpec((TK, TN), lambda r, n, k: (k, n))],
            out_specs=pl.BlockSpec((TR, TN), lambda r, n, k: (r, n)),
            scratch_shapes=[pltpu.VMEM((TR, TN), jnp.float32)],
            compiler_params=pltpu.CompilerParams(
                dimension_semantics=("parallel", "parallel", "arbitrary"),
                vmem_limit_bytes=vmem_limit),
            cost_estimate=cost,
        )(x_pad, w)

    return out[:rows, :size].reshape(B, C, size)


def inverse_fft_layer(x, size, compute_dtype=jnp.bfloat16, out_dtype=jnp.float32):
    """Equivalent of torch.fft.irfft(x, n=size, dim=2) for complex x of shape (B, C, M).

    compute_dtype=jnp.bfloat16 (default) uses the MXU-native input dtype and halves
    HBM/VMEM traffic (accumulation stays f32).  Pass jnp.float32 for strict tolerances.
    """
    return _inverse_fft_impl(x, int(size), compute_dtype, out_dtype)


if __name__ == "__main__":
    key = jax.random.PRNGKey(0)
    k1, k2, k3, k4 = jax.random.split(key, 4)

    # Primary check: small shapes consistent with the module's forward (B, C, modes).
    B, C, SIZE = 2, 4, 16
    M = SIZE // 2 + 1  # 9 rfft modes
    x = (jax.random.normal(k1, (B, C, M), dtype=jnp.float32)
         + 1j * jax.random.normal(k2, (B, C, M), dtype=jnp.float32))
    ref = jnp.fft.irfft(x, n=SIZE, axis=2)

    # Strict-tolerance f32 path.
    out_f32 = jax.block_until_ready(inverse_fft_layer(x, SIZE, compute_dtype=jnp.float32))
    np.testing.assert_allclose(np.asarray(out_f32), np.asarray(ref), rtol=1e-4, atol=1e-5)

    # Default bf16 path (MXU-native operands, f32 accumulation): bf16-level tolerance.
    out_bf16 = jax.block_until_ready(inverse_fft_layer(x, SIZE))
    np.testing.assert_allclose(np.asarray(out_bf16), np.asarray(ref), rtol=2e-2, atol=2e-2)

    # Secondary check: odd shapes exercising row / K / output-N padding paths.
    B2, C2, SIZE2 = 3, 5, 40
    M2 = SIZE2 // 2 + 1
    x2 = (jax.random.normal(k3, (B2, C2, M2), dtype=jnp.float32)
          + 1j * jax.random.normal(k4, (B2, C2, M2), dtype=jnp.float32))
    ref2 = jnp.fft.irfft(x2, n=SIZE2, axis=2)

    out2 = jax.block_until_ready(inverse_fft_layer(x2, SIZE2, compute_dtype=jnp.float32))
    np.testing.assert_allclose(np.asarray(out2), np.asarray(ref2), rtol=1e-4, atol=1e-5)

    print("KERNEL_OK")
</pallas_src>

<mosaic_0001>
module attributes {stable_mosaic.version = 11 : i64} {
  func.func @_irfft_matmul_kernel(%arg0: i32, %arg1: i32, %arg2: memref<8x128xf32, #tpu.memory_space<vmem>>, %arg3: memref<128x128xf32, #tpu.memory_space<vmem>>, %arg4: memref<8x128xf32, #tpu.memory_space<vmem>>) attributes {dimension_semantics = [#tpu.dimension_semantics<parallel>, #tpu.dimension_semantics<parallel>], iteration_bounds = array<i64: 1, 1>, scalar_prefetch = 0 : i64, scratch_operands = 0 : i64, tpu.core_type = #tpu.core_type<tc>, window_params = [{transform_indices = @transform_0, window_bounds = array<i64: 8, 128>}, {transform_indices = @transform_1, window_bounds = array<i64: 128, 128>}, {transform_indices = @transform_2, window_bounds = array<i64: 8, 128>}]} {
    %c0 = arith.constant 0 : index
    %c0_0 = arith.constant 0 : index
    %0 = vector.load %arg2[%c0, %c0_0] : memref<8x128xf32, #tpu.memory_space<vmem>>, vector<8x128xf32>
    %c0_1 = arith.constant 0 : index
    %c0_2 = arith.constant 0 : index
    %1 = vector.load %arg3[%c0_1, %c0_2] : memref<128x128xf32, #tpu.memory_space<vmem>>, vector<128x128xf32>
    %cst = arith.constant dense<0.000000e+00> : vector<8x128xf32>
    %2 = tpu.matmul %0, %1, %cst {dimension_numbers = #tpu.dot_dimension_numbers<[1], [0], [0], [1], [0, 0, 1, 1], [], []>} : vector<8x128xf32>, vector<128x128xf32>, vector<8x128xf32> -> vector<8x128xf32>
    %c0_3 = arith.constant 0 : index
    %c0_4 = arith.constant 0 : index
    %3 = vector.load %arg4[%c0_3, %c0_4] : memref<8x128xf32, #tpu.memory_space<vmem>>, vector<8x128xf32>
    tpu.vector_store %arg4[%c0_3, %c0_4], %2 {strides = array<i32>} : memref<8x128xf32, #tpu.memory_space<vmem>>, vector<8x128xf32>,
    return
  }
  func.func @transform_0(%arg0: i32, %arg1: i32) -> (i32, i32) {
    %c0_i32 = arith.constant 0 : i32
    %c0_i32_0 = arith.constant 0 : i32
    return %arg1, %c0_i32 : i32, i32
  }
  func.func @transform_1(%arg0: i32, %arg1: i32) -> (i32, i32) {
    %c0_i32 = arith.constant 0 : i32
    %c0_i32_0 = arith.constant 0 : i32
    return %c0_i32, %arg0 : i32, i32
  }
  func.func @transform_2(%arg0: i32, %arg1: i32) -> (i32, i32) {
    %c0_i32 = arith.constant 0 : i32
    return %arg1, %arg0 : i32, i32
  }
}

</mosaic_0001>

<llo_original>
// kernel: custom-call.1
$region0: #{custom-call.1}
  %s0 = inlined_call_operand.hbm [shape: c64[2,4,9], index: 0, kind: input, shape index: {}]
  %s1 = inlined_call_operand.vmem [shape: f32[2,4,9], index: 1, kind: output, shape index: {}]
  %s2 = scalar_lea.hbm %s0, 128
  $region1: #{custom-call.1} parent=0
    #allocation0 [shape = 's32[1]{0}', space=sflag, size = 0x4, scoped, tag = 'scoped memory for custom-call.1']
    %3 = vsyncpa [#allocation0], 0
    %s4 = sshll.u32 %s1, 4
    %s5 = int_to_ptr.vmem [resolvable:$true] %s4
    %7 = dma.hbm_to_vmem [thread:$0]  %s2, 128, %s5, [#allocation0]
    %8 = dma.done [#allocation0], 128
    %9 = vsyncpa [#allocation0], 1

// kernel: custom-call
$region0: #{custom-call}
  %s0 = inlined_call_operand.hbm [shape: c64[2,4,9], index: 0, kind: input, shape index: {}]
  %s1 = inlined_call_operand.vmem [shape: f32[2,4,9], index: 1, kind: output, shape index: {}]
  $region1: #{custom-call} parent=0
    #allocation0 [shape = 's32[1]{0}', space=sflag, size = 0x4, scoped, tag = 'scoped memory for custom-call']
    %2 = vsyncpa [#allocation0], 0
    %s3 = sshll.u32 %s1, 4
    %s4 = int_to_ptr.vmem [resolvable:$true] %s3
    %6 = dma.hbm_to_vmem [thread:$0]  %s0, 128, %s4, [#allocation0]
    %7 = dma.done [#allocation0], 128
    %8 = vsyncpa [#allocation0], 1

// kernel: _inverse_fft_impl.1
$region0: #{_inverse_fft_impl.1}
  #allocation0 [shape = 'u32[]', space=smem, size = 0x4, offset = 0x4, fixed_abs, tag = 'smem constant byte address 0x4 - core index']
  #allocation1 [shape = 'u32[144,128]{1,0:T(1,128)}', space=vmem, size = 0x12000, scoped, tag = 'internal scratch']
  %s0 = inlined_call_operand.vmem [shape: f32[8,128], index: 0, kind: input, shape index: {}]
  %s1 = inlined_call_operand.hbm [shape: f32[128,128], index: 1, kind: input, shape index: {}]
  %s2 = inlined_call_operand.hbm [shape: f32[8,128], index: 2, kind: output, shape index: {}]
  %s3 = sld [smem:[#allocation0]]
  $region22: #{_inverse_fft_impl.1} parent=0
    _
  %s5 = ssub.s32 1, %s3
  %s6 = scalar_select 0, %s5, %s3
  $region1: #{_inverse_fft_impl.1} parent=0
    #allocation2 [shape = 'u8[65536]{0}', space=vmem, size = 0x10000, scoped, tag = 'input window, operand 1, single buffered']
    #allocation3 [shape = 's32[1]{0}', space=sflag, size = 0x4, scoped, tag = 'scoped memory for _inverse_fft_impl.1']
    #allocation4 [shape = 's32[1]{0}', space=sflag, size = 0x4, scoped, tag = 'scoped memory for _inverse_fft_impl.1']
    #allocation5 [shape = 'u8[4096]{0}', space=vmem, size = 0x1000, scoped, tag = 'output window, operand 0, single buffered']
    %7 = vsyncpa [#allocation3], 0
    %8 = vsyncpa [#allocation4], 0
    // Predicated region
    $region2: #{_inverse_fft_impl.1} parent=1 // pred_check
      _
    $region3: #{_inverse_fft_impl.1} parent=1 // pred_check_branch
      %10 = sbr.rel (0) target = $region5
    $region4: #{_inverse_fft_impl.1} parent=1 // pred_region
      _
    $region5: #{_inverse_fft_impl.1} parent=1 // pred_fallthru
      _
    // Predicated region
    $region6: #{_inverse_fft_impl.1} parent=1 // pred_check
      _
    $region7: #{_inverse_fft_impl.1} parent=1 // pred_check_branch
      %12 = sbr.rel (0) target = $region9
    $region8: #{_inverse_fft_impl.1} parent=1 // pred_region
      %s14 = ssub.s32 2048, 2048
      %15 = vsyncadd [#allocation3], %s14
      %s16 = sshll.u32 [#allocation2], 4
      %s17 = int_to_ptr.vmem [resolvable:$true] %s16
      %22 = dma.hbm_to_vmem [thread:$0]  %s1, 2048, %s17, [#allocation3], 128, 128, 8
    $region9: #{_inverse_fft_impl.1} parent=1 // pred_fallthru
      _
    // Predicated region
    $region10: #{_inverse_fft_impl.1} parent=1 // pred_check
      _
    $region11: #{_inverse_fft_impl.1} parent=1 // pred_check_branch
      %24 = sbr.rel (0) target = $region13
    $region12: #{_inverse_fft_impl.1} parent=1 // pred_region
      %25 = dma.done [#allocation3], 2048
    $region13: #{_inverse_fft_impl.1} parent=1 // pred_fallthru
      _
    %v26 = vld [vmem:[%s0] sm:$0xff]
    %v27 = vld [vmem:[#allocation2] sm:$0xff]
    %v28 = vld [vmem:[#allocation2 + $0x8] sm:$0xff]
    %v29 = vld [vmem:[#allocation2 + $0x10] sm:$0xff]
    %v30 = vld [vmem:[#allocation2 + $0x18] sm:$0xff]
    %v31 = vld [vmem:[#allocation2 + $0x20] sm:$0xff]
    %v32 = vld [vmem:[#allocation2 + $0x28] sm:$0xff]
    %v33 = vld [vmem:[#allocation2 + $0x30] sm:$0xff]
    %v34 = vld [vmem:[#allocation2 + $0x38] sm:$0xff]
    %v35 = vld [vmem:[#allocation2 + $0x40] sm:$0xff]
    %v36 = vld [vmem:[#allocation2 + $0x48] sm:$0xff]
    %v37 = vld [vmem:[#allocation2 + $0x50] sm:$0xff]
    %v38 = vld [vmem:[#allocation2 + $0x58] sm:$0xff]
    %v39 = vld [vmem:[#allocation2 + $0x60] sm:$0xff]
    %v40 = vld [vmem:[#allocation2 + $0x68] sm:$0xff]
    %v41 = vld [vmem:[#allocation2 + $0x70] sm:$0xff]
    %v42 = vld [vmem:[#allocation2 + $0x78] sm:$0xff]
    %43 = vmatprep.subr.mxu0 0.0
    %44 = vmatpush1.msra.mxu0 %v42
    %45 = vmatprep.subr.mxu0 0.0
    %46 = vmatpush1.msra.mxu0 %v41
    %47 = vmatprep.subr.mxu0 0.0
    %48 = vmatpush1.msra.mxu0 %v40
    %49 = vmatprep.subr.mxu0 0.0
    %50 = vmatpush1.msra.mxu0 %v39
    %51 = vmatprep.subr.mxu0 0.0
    %52 = vmatpush1.msra.mxu0 %v38
    %53 = vmatprep.subr.mxu0 0.0
    %54 = vmatpush1.msra.mxu0 %v37
    %55 = vmatprep.subr.mxu0 0.0
    %56 = vmatpush1.msra.mxu0 %v36
    %57 = vmatprep.subr.mxu0 0.0
    %58 = vmatpush1.msra.mxu0 %v35
    %59 = vmatprep.subr.mxu0 0.0
    %60 = vmatpush1.msra.mxu0 %v34
    %61 = vmatprep.subr.mxu0 0.0
    %62 = vmatpush1.msra.mxu0 %v33
    %63 = vmatprep.subr.mxu0 0.0
    %64 = vmatpush1.msra.mxu0 %v32
    %65 = vmatprep.subr.mxu0 0.0
    %66 = vmatpush1.msra.mxu0 %v31
    %67 = vmatprep.subr.mxu0 0.0
    %68 = vmatpush1.msra.mxu0 %v30
    %69 = vmatprep.subr.mxu0 0.0
    %70 = vmatpush1.msra.mxu0 %v29
    %71 = vmatprep.subr.mxu0 0.0
    %72 = vmatpush1.msra.mxu0 %v28
    %73 = vmatprep.subr.mxu0 0.0
    %74 = vmatpush1.msra.mxu0 %v27
    %75 = vmatprep.subr.mxu0 0.0
    %76 = vmatpush2.msra.mxu0 0.0
    %77 = vmatprep.subr.mxu0 0.0
    %78 = vmatpush2.msra.mxu0 0.0
    %79 = vmatprep.subr.mxu0 0.0
    %80 = vmatpush2.msra.mxu0 0.0
    %81 = vmatprep.subr.mxu0 0.0
    %82 = vmatpush2.msra.mxu0 0.0
    %83 = vmatprep.subr.mxu0 0.0
    %84 = vmatpush2.msra.mxu0 0.0
    %85 = vmatprep.subr.mxu0 0.0
    %86 = vmatpush2.msra.mxu0 0.0
    %87 = vmatprep.subr.mxu0 0.0
    %88 = vmatpush2.msra.mxu0 0.0
    %89 = vmatprep.subr.mxu0 0.0
    %90 = vmatpush2.msra.mxu0 0.0
    %91 = vmatprep.subr.mxu0 0.0
    %92 = vmatpush2.msra.mxu0 0.0
    %93 = vmatprep.subr.mxu0 0.0
    %94 = vmatpush2.msra.mxu0 0.0
    %95 = vmatprep.subr.mxu0 0.0
    %96 = vmatpush2.msra.mxu0 0.0
    %97 = vmatprep.subr.mxu0 0.0
    %98 = vmatpush2.msra.mxu0 0.0
    %99 = vmatprep.subr.mxu0 0.0
    %100 = vmatpush2.msra.mxu0 0.0
    %101 = vmatprep.subr.mxu0 0.0
    %102 = vmatpush2.msra.mxu0 0.0
    %103 = vmatprep.subr.mxu0 0.0
    %104 = vmatpush2.msra.mxu0 0.0
    %105 = vmatprep.subr.mxu0 0.0
    %106 = vmatpush2.msra.mxu0 0.0
    %107 = vmatprep.mubr.f32.mxu0 0.0
    %108 = vmatmul.mubr.f32.gmra.mxu0 %v26
    %v109 = vpop.f32.mrf.mxu0
    %v110 = vadd.f32 0.0, %v109
    %v111 = vpop.f32.mrf.mxu0
    %112 = vdwg.mxu0
    %113 = vst [vmem:[#allocation5] sm:$0xff] %v110
    // Predicated region
    $region14: #{_inverse_fft_impl.1} parent=1 // pred_check
      _
    $region15: #{_inverse_fft_impl.1} parent=1 // pred_check_branch
      %115 = sbr.rel (0) target = $region17
    $region16: #{_inverse_fft_impl.1} parent=1 // pred_region
      %s117 = ssub.s32 128, 128
      %118 = vsyncadd [#allocation4], %s117
      %s120 = sshll.u32 [#allocation5], 4
      %s121 = int_to_ptr.vmem [resolvable:$true] %s120
      %123 = dma.vmem_to_hbm [thread:$0]  %s121, 128, %s2, [#allocation4]
    $region17: #{_inverse_fft_impl.1} parent=1 // pred_fallthru
      _
    // Predicated region
    $region18: #{_inverse_fft_impl.1} parent=1 // pred_check
      _
    $region19: #{_inverse_fft_impl.1} parent=1 // pred_check_branch
      %125 = sbr.rel (0) target = $region21
    $region20: #{_inverse_fft_impl.1} parent=1 // pred_region
      %126 = dma.done [#allocation4], 128
    $region21: #{_inverse_fft_impl.1} parent=1 // pred_fallthru
      _
    %127 = vsyncpa [#allocation3], 1
    %128 = vsyncpa [#allocation4], 1

</llo_original>
